<compile_context>
chip_gen: v5e
topology: v5e:2x2
jax: 0.10.0
libtpu: 0.0.40
codegen_flags: <defaults>
</compile_context>

<pallas_src>
import functools

import jax
import jax.numpy as jnp
from jax.experimental import pallas as pl
from jax.experimental.pallas import tpu as pltpu

# ---- "args" -----------------------------------------------------------------
FEATURE_DIM = 4          # in_channels of the conv
N_POLICY_FILTERS = 2
POLICY_KERNEL_SIZE = 1   # TODO(synk): only kernel_size=1/stride=1/padding=0 conv implemented
POLICY_STRIDE = 1
POLICY_PADDING = 0
POLICY_ACT = "relu"
BORDER_SIZE = 8
BOARD = 8                # input spatial H = W; in_dense_size == BOARD here
BN_EPS = 1e-5
LANE = 128


# ---- fused Pallas kernel ----------------------------------------------------
def _policy_head_kernel(bn_ref, x_ref, wc_ref, wd_ref, bd_ref, o_ref):
    """Fused conv1x1 + BatchNorm2d (batch stats) + ReLU + Linear.

    bn_ref: SMEM (2, Cout)            row 0 = gamma, row 1 = beta
    x_ref : VMEM (B, Cin*HW)          free (C,H,W)-order flatten of the NCHW input
    wc_ref: VMEM (Cin*HW, Cout*HW)    1x1 conv folded into a block-diag matmul weight
    wd_ref: VMEM (Cout*HW, OUT_pad)   dense weight, transposed, OUT zero-padded to 128
    bd_ref: VMEM (1, OUT_pad)         dense bias, zero-padded
    o_ref : VMEM (B, OUT_pad)         lane-dense output (padding sliced off outside)
    """
    bsz = x_ref.shape[0]
    cout = bn_ref.shape[1]
    hw = wc_ref.shape[1] // cout
    inv_n = 1.0 / float(bsz * hw)

    # 1x1 conv as a single lane-dense MXU matmul -> activation slab (B, Cout*HW).
    # (conv bias omitted: exactly cancelled by the BN batch-mean subtraction.)
    slab = jnp.dot(x_ref[...], wc_ref[...], preferred_element_type=jnp.float32)
    sq = slab * slab
    lane = jax.lax.broadcasted_iota(jnp.int32, slab.shape, dimension=1)

    # One-pass BatchNorm2d batch statistics per channel (channel c occupies
    # lanes [c*HW, (c+1)*HW)).  sum and sumsq are independent reductions, so
    # they interleave on the XLU instead of forming a serial two-pass chain.
    scales, shifts = [], []
    for c in range(cout):                                   # Cout=2: unrolled
        m = (lane >= c * hw) & (lane < (c + 1) * hw)
        s1 = jnp.sum(jnp.where(m, slab, 0.0))
        s2 = jnp.sum(jnp.where(m, sq, 0.0))
        mean = s1 * inv_n
        var = jnp.maximum(s2 * inv_n - mean * mean, 0.0)    # biased var, clamped
        scale = bn_ref[0, c] * jax.lax.rsqrt(var + BN_EPS)
        scales.append(scale)
        shifts.append(bn_ref[1, c] - mean * scale)

    # Per-lane scale/shift via a VPU select chain: no lane movement.
    scale_vec, shift_vec = scales[-1], shifts[-1]
    for c in range(cout - 2, -1, -1):
        m = lane < (c + 1) * hw
        scale_vec = jnp.where(m, scales[c], scale_vec)
        shift_vec = jnp.where(m, shifts[c], shift_vec)

    act = jnp.maximum(slab * scale_vec + shift_vec, 0.0)    # BN affine + ReLU

    # Dense layer: one K=Cout*HW (=128), N=OUT_pad (=128) MXU matmul,
    # full-lane (unmasked) output store.
    # TODO(synk): for large B, cast act / wd to bf16 for full-rate MXU on
    # v6e/v7x (kept f32 here for bit-level fidelity at tiny shapes).
    o_ref[...] = (jnp.dot(act, wd_ref[...], preferred_element_type=jnp.float32)
                  + bd_ref[...])


# ---- wrapper ----------------------------------------------------------------
@functools.partial(jax.jit, static_argnums=(2,))
def policy_head_forward(x_nchw, kparams, out_dim):
    B, C, H, W = x_nchw.shape
    x2 = x_nchw.reshape(B, C * H * W)        # free reshape of contiguous NCHW
    out_pad = kparams["dense_b_pad"].shape[-1]
    # TODO(synk): single-block design couples the BN batch statistics to
    # "everything fits in one block"; for large B add a batch grid axis
    # ("parallel" -> v7x dual-TC) with a cross-block sum/sumsq stats pass,
    # keep weights resident via constant index_maps, and size the batch tile
    # against v7x's 64 MiB VMEM (not v5e/v6e's 128 MiB).
    out = pl.pallas_call(
        _policy_head_kernel,
        out_shape=jax.ShapeDtypeStruct((B, out_pad), jnp.float32),
        in_specs=[
            pl.BlockSpec(memory_space=pltpu.MemorySpace.SMEM),   # BN gamma/beta
            pl.BlockSpec(memory_space=pltpu.MemorySpace.VMEM),   # activations (B, C*HW)
            pl.BlockSpec(memory_space=pltpu.MemorySpace.VMEM),   # conv-as-matmul weight
            pl.BlockSpec(memory_space=pltpu.MemorySpace.VMEM),   # dense weight (padded)
            pl.BlockSpec(memory_space=pltpu.MemorySpace.VMEM),   # dense bias (padded)
        ],
        out_specs=pl.BlockSpec(memory_space=pltpu.MemorySpace.VMEM),
    )(kparams["bn_ab"], x2, kparams["conv_w_mm"],
      kparams["dense_w_pad"], kparams["dense_b_pad"])
    return out[:, :out_dim]                  # drop lane padding (fused in same jit)


# ---- one-time offline parameter reorganization ------------------------------
def prepare_kernel_params(tp):
    cout, cin = tp["conv_w"].shape              # torch Conv2d 1x1 weight (Cout, Cin)
    out_dim, k = tp["dense_w"].shape            # torch Linear weight (OUT, Cout*H*W)
    hw = k // cout
    out_pad = max(LANE, ((out_dim + LANE - 1) // LANE) * LANE)

    # 1x1 conv folded into a block-structured matmul so the activation slab is
    # produced lane-dense by one MXU push.  NOTE: this weight scales as HW^2;
    # for much larger boards switch back to a VPU channel-mix.
    conv_w_mm = jnp.kron(tp["conv_w"].T.astype(jnp.float32),
                         jnp.eye(hw, dtype=jnp.float32))          # (Cin*HW, Cout*HW)

    dense_w = tp["dense_w"].T.astype(jnp.float32)                  # (Cout*HW, OUT)
    dense_w_pad = jnp.zeros((k, out_pad), jnp.float32).at[:, :out_dim].set(dense_w)
    dense_b_pad = jnp.zeros((1, out_pad), jnp.float32).at[0, :out_dim].set(
        tp["dense_b"].astype(jnp.float32))

    return {
        # conv bias intentionally dropped: cancelled by training-mode BN mean
        # subtraction.  TODO(synk): reinstate it (and use running stats) if the
        # module is ever run in eval mode.
        "bn_ab": jnp.stack([tp["bn_gamma"], tp["bn_beta"]], axis=0).astype(jnp.float32),
        "conv_w_mm": conv_w_mm,
        "dense_w_pad": dense_w_pad,
        "dense_b_pad": dense_b_pad,
    }


# ---- pure-JAX reference (faithful to the PyTorch module) --------------------
def reference(x_nchw, tp):
    y = jnp.einsum("bchw,oc->bohw", x_nchw, tp["conv_w"])
    y = y + tp["conv_b"][None, :, None, None]
    mean = jnp.mean(y, axis=(0, 2, 3), keepdims=True)
    var = jnp.mean(jnp.square(y - mean), axis=(0, 2, 3), keepdims=True)
    y = (y - mean) * jax.lax.rsqrt(var + BN_EPS)
    y = y * tp["bn_gamma"][None, :, None, None] + tp["bn_beta"][None, :, None, None]
    y = jnp.maximum(y, 0.0)
    y = y.reshape(y.shape[0], -1)               # PyTorch flatten: (C, H, W) order
    return y @ tp["dense_w"].T + tp["dense_b"]


# ---- main -------------------------------------------------------------------
if __name__ == "__main__":
    key = jax.random.PRNGKey(0)
    kx, kcw, kcb, kg, kb, kdw, kdb = jax.random.split(key, 7)

    B = 2
    x = jax.random.normal(kx, (B, FEATURE_DIM, BOARD, BOARD), dtype=jnp.float32)

    in_dense = N_POLICY_FILTERS * BOARD * BOARD          # n_policy_filters * in_dense_size^2
    out_dense = BORDER_SIZE * BORDER_SIZE                # border_size^2

    torch_params = {
        "conv_w": 0.1 * jax.random.normal(kcw, (N_POLICY_FILTERS, FEATURE_DIM), jnp.float32),
        "conv_b": 0.1 * jax.random.normal(kcb, (N_POLICY_FILTERS,), jnp.float32),
        "bn_gamma": 1.0 + 0.1 * jax.random.normal(kg, (N_POLICY_FILTERS,), jnp.float32),
        "bn_beta": 0.1 * jax.random.normal(kb, (N_POLICY_FILTERS,), jnp.float32),
        "dense_w": 0.05 * jax.random.normal(kdw, (out_dense, in_dense), jnp.float32),
        "dense_b": 0.05 * jax.random.normal(kdb, (out_dense,), jnp.float32),
    }
    kparams = prepare_kernel_params(torch_params)

    out = policy_head_forward(x, kparams, out_dense)
    out = jax.block_until_ready(out)
    assert out.shape == (B, out_dense), out.shape

    ref = jax.block_until_ready(reference(x, torch_params))
    max_err = float(jnp.max(jnp.abs(out - ref)))
    assert jnp.allclose(out, ref, atol=1e-4, rtol=1e-4), max_err

    print("KERNEL_OK")
</pallas_src>

<mosaic_0001>
module attributes {stable_mosaic.version = 11 : i64} {
  func.func @_policy_head_kernel(%arg0: memref<2x2xf32, #tpu.memory_space<smem>>, %arg1: memref<2x256xf32, #tpu.memory_space<vmem>>, %arg2: memref<256x128xf32, #tpu.memory_space<vmem>>, %arg3: memref<128x128xf32, #tpu.memory_space<vmem>>, %arg4: memref<1x128xf32, #tpu.memory_space<vmem>>, %arg5: memref<2x128xf32, #tpu.memory_space<vmem>>) attributes {dimension_semantics = [], scalar_prefetch = 0 : i64, scratch_operands = 0 : i64, tpu.core_type = #tpu.core_type<tc>} {
    %c0 = arith.constant 0 : index
    %c0_0 = arith.constant 0 : index
    %0 = vector.load %arg1[%c0, %c0_0] : memref<2x256xf32, #tpu.memory_space<vmem>>, vector<2x256xf32>
    %c0_1 = arith.constant 0 : index
    %c0_2 = arith.constant 0 : index
    %1 = vector.load %arg2[%c0_1, %c0_2] : memref<256x128xf32, #tpu.memory_space<vmem>>, vector<256x128xf32>
    %cst = arith.constant dense<0.000000e+00> : vector<2x128xf32>
    %2 = tpu.matmul %0, %1, %cst {dimension_numbers = #tpu.dot_dimension_numbers<[1], [0], [0], [1], [0, 0, 1, 1], [], []>} : vector<2x256xf32>, vector<256x128xf32>, vector<2x128xf32> -> vector<2x128xf32>
    %3 = arith.mulf %2, %2 : vector<2x128xf32>
    %4 = tpu.iota {dimensions = array<i32: 1>} : vector<2x128xi32>
    %c0_i32 = arith.constant 0 : i32
    %5 = vector.broadcast %c0_i32 : i32 to vector<2x128xi32>
    %6 = arith.cmpi sge, %4, %5 : vector<2x128xi32>
    %c64_i32 = arith.constant 64 : i32
    %7 = vector.broadcast %c64_i32 : i32 to vector<2x128xi32>
    %8 = arith.cmpi slt, %4, %7 : vector<2x128xi32>
    %9 = arith.andi %6, %8 : vector<2x128xi1>
    %cst_3 = arith.constant 0.000000e+00 : f32
    %10 = vector.broadcast %cst_3 : f32 to vector<2x128xf32>
    %11 = arith.select %9, %2, %10 : vector<2x128xi1>, vector<2x128xf32>
    %12 = vector.shape_cast %11 : vector<2x128xf32> to vector<1x2x128xf32>
    %cst_4 = arith.constant dense<0.000000e+00> : vector<1xf32>
    %13 = vector.multi_reduction <add>, %12, %cst_4 [1, 2] : vector<1x2x128xf32> to vector<1xf32>
    %14 = vector.shape_cast %13 : vector<1xf32> to vector<1x1x1xf32>
    %15 = vector.extract %14[0, 0, 0] : f32 from vector<1x1x1xf32>
    %cst_5 = arith.constant 0.000000e+00 : f32
    %16 = vector.broadcast %cst_5 : f32 to vector<2x128xf32>
    %17 = arith.select %9, %3, %16 : vector<2x128xi1>, vector<2x128xf32>
    %18 = vector.shape_cast %17 : vector<2x128xf32> to vector<1x2x128xf32>
    %cst_6 = arith.constant dense<0.000000e+00> : vector<1xf32>
    %19 = vector.multi_reduction <add>, %18, %cst_6 [1, 2] : vector<1x2x128xf32> to vector<1xf32>
    %20 = vector.shape_cast %19 : vector<1xf32> to vector<1x1x1xf32>
    %21 = vector.extract %20[0, 0, 0] : f32 from vector<1x1x1xf32>
    %cst_7 = arith.constant 7.812500e-03 : f32
    %22 = arith.mulf %15, %cst_7 : f32
    %cst_8 = arith.constant 7.812500e-03 : f32
    %23 = arith.mulf %21, %cst_8 : f32
    %24 = arith.mulf %22, %22 : f32
    %25 = arith.subf %23, %24 : f32
    %cst_9 = arith.constant 0.000000e+00 : f32
    %26 = arith.maximumf %25, %cst_9 : f32
    %c0_10 = arith.constant 0 : index
    %c0_11 = arith.constant 0 : index
    %27 = memref.load %arg0[%c0_10, %c0_11] : memref<2x2xf32, #tpu.memory_space<smem>>
    %cst_12 = arith.constant 9.99999974E-6 : f32
    %28 = arith.addf %26, %cst_12 : f32
    %29 = math.rsqrt %28 : f32
    %30 = arith.mulf %27, %29 : f32
    %c1 = arith.constant 1 : index
    %c0_13 = arith.constant 0 : index
    %31 = memref.load %arg0[%c1, %c0_13] : memref<2x2xf32, #tpu.memory_space<smem>>
    %32 = arith.mulf %22, %30 : f32
    %33 = arith.subf %31, %32 : f32
    %c64_i32_14 = arith.constant 64 : i32
    %34 = vector.broadcast %c64_i32_14 : i32 to vector<2x128xi32>
    %35 = arith.cmpi sge, %4, %34 : vector<2x128xi32>
    %c128_i32 = arith.constant 128 : i32
    %36 = vector.broadcast %c128_i32 : i32 to vector<2x128xi32>
    %37 = arith.cmpi slt, %4, %36 : vector<2x128xi32>
    %38 = arith.andi %35, %37 : vector<2x128xi1>
    %cst_15 = arith.constant 0.000000e+00 : f32
    %39 = vector.broadcast %cst_15 : f32 to vector<2x128xf32>
    %40 = arith.select %38, %2, %39 : vector<2x128xi1>, vector<2x128xf32>
    %41 = vector.shape_cast %40 : vector<2x128xf32> to vector<1x2x128xf32>
    %cst_16 = arith.constant dense<0.000000e+00> : vector<1xf32>
    %42 = vector.multi_reduction <add>, %41, %cst_16 [1, 2] : vector<1x2x128xf32> to vector<1xf32>
    %43 = vector.shape_cast %42 : vector<1xf32> to vector<1x1x1xf32>
    %44 = vector.extract %43[0, 0, 0] : f32 from vector<1x1x1xf32>
    %cst_17 = arith.constant 0.000000e+00 : f32
    %45 = vector.broadcast %cst_17 : f32 to vector<2x128xf32>
    %46 = arith.select %38, %3, %45 : vector<2x128xi1>, vector<2x128xf32>
    %47 = vector.shape_cast %46 : vector<2x128xf32> to vector<1x2x128xf32>
    %cst_18 = arith.constant dense<0.000000e+00> : vector<1xf32>
    %48 = vector.multi_reduction <add>, %47, %cst_18 [1, 2] : vector<1x2x128xf32> to vector<1xf32>
    %49 = vector.shape_cast %48 : vector<1xf32> to vector<1x1x1xf32>
    %50 = vector.extract %49[0, 0, 0] : f32 from vector<1x1x1xf32>
    %cst_19 = arith.constant 7.812500e-03 : f32
    %51 = arith.mulf %44, %cst_19 : f32
    %cst_20 = arith.constant 7.812500e-03 : f32
    %52 = arith.mulf %50, %cst_20 : f32
    %53 = arith.mulf %51, %51 : f32
    %54 = arith.subf %52, %53 : f32
    %cst_21 = arith.constant 0.000000e+00 : f32
    %55 = arith.maximumf %54, %cst_21 : f32
    %c0_22 = arith.constant 0 : index
    %c1_23 = arith.constant 1 : index
    %56 = memref.load %arg0[%c0_22, %c1_23] : memref<2x2xf32, #tpu.memory_space<smem>>
    %cst_24 = arith.constant 9.99999974E-6 : f32
    %57 = arith.addf %55, %cst_24 : f32
    %58 = math.rsqrt %57 : f32
    %59 = arith.mulf %56, %58 : f32
    %c1_25 = arith.constant 1 : index
    %c1_26 = arith.constant 1 : index
    %60 = memref.load %arg0[%c1_25, %c1_26] : memref<2x2xf32, #tpu.memory_space<smem>>
    %61 = arith.mulf %51, %59 : f32
    %62 = arith.subf %60, %61 : f32
    %c64_i32_27 = arith.constant 64 : i32
    %63 = vector.broadcast %c64_i32_27 : i32 to vector<2x128xi32>
    %64 = arith.cmpi slt, %4, %63 : vector<2x128xi32>
    %65 = vector.broadcast %30 : f32 to vector<2x128xf32>
    %66 = vector.broadcast %59 : f32 to vector<2x128xf32>
    %67 = arith.select %64, %65, %66 : vector<2x128xi1>, vector<2x128xf32>
    %68 = vector.broadcast %33 : f32 to vector<2x128xf32>
    %69 = vector.broadcast %62 : f32 to vector<2x128xf32>
    %70 = arith.select %64, %68, %69 : vector<2x128xi1>, vector<2x128xf32>
    %71 = arith.mulf %2, %67 : vector<2x128xf32>
    %72 = arith.addf %71, %70 : vector<2x128xf32>
    %cst_28 = arith.constant 0.000000e+00 : f32
    %73 = vector.broadcast %cst_28 : f32 to vector<2x128xf32>
    %74 = arith.maximumf %72, %73 : vector<2x128xf32>
    %c0_29 = arith.constant 0 : index
    %c0_30 = arith.constant 0 : index
    %75 = vector.load %arg3[%c0_29, %c0_30] : memref<128x128xf32, #tpu.memory_space<vmem>>, vector<128x128xf32>
    %cst_31 = arith.constant dense<0.000000e+00> : vector<2x128xf32>
    %76 = tpu.matmul %74, %75, %cst_31 {dimension_numbers = #tpu.dot_dimension_numbers<[1], [0], [0], [1], [0, 0, 1, 1], [], []>} : vector<2x128xf32>, vector<128x128xf32>, vector<2x128xf32> -> vector<2x128xf32>
    %c0_32 = arith.constant 0 : index
    %c0_33 = arith.constant 0 : index
    %77 = vector.load %arg4[%c0_32, %c0_33] : memref<1x128xf32, #tpu.memory_space<vmem>>, vector<1x128xf32>
    %78 = vector.broadcast %77 : vector<1x128xf32> to vector<2x128xf32>
    %79 = arith.addf %76, %78 : vector<2x128xf32>
    %c0_34 = arith.constant 0 : index
    %c0_35 = arith.constant 0 : index
    %80 = vector.load %arg5[%c0_34, %c0_35] : memref<2x128xf32, #tpu.memory_space<vmem>>, vector<2x128xf32>
    tpu.vector_store %arg5[%c0_34, %c0_35], %79 {strides = array<i32>} : memref<2x128xf32, #tpu.memory_space<vmem>>, vector<2x128xf32>,
    return
  }
}

</mosaic_0001>

<llo_original>
// kernel: policy_head_forward.1
$region0: #{policy_head_forward.1}
  #allocation0 [shape = 'u32[]', space=smem, size = 0x4, offset = 0x4, fixed_abs, tag = 'smem constant byte address 0x4 - core index']
  #allocation1 [shape = 'u32[72,128]{1,0:T(1,128)}', space=vmem, size = 0x9000, scoped, tag = 'internal scratch']
  %s0 = inlined_call_operand.vmem [shape: f32[2,2], index: 0, kind: input, shape index: {}]
  %s1 = inlined_call_operand.vmem [shape: f32[2,256], index: 1, kind: input, shape index: {}]
  %s2 = inlined_call_operand.hbm [shape: f32[256,128], index: 2, kind: input, shape index: {}]
  %s3 = inlined_call_operand.hbm [shape: f32[128,128], index: 3, kind: input, shape index: {}]
  %s4 = inlined_call_operand.vmem [shape: f32[1,128], index: 4, kind: input, shape index: {}]
  %s5 = inlined_call_operand.hbm [shape: f32[2,128], index: 5, kind: output, shape index: {}]
  %s6 = sld [smem:[#allocation0]]
  $region42: #{policy_head_forward.1} parent=0
    _
  %s8 = ssub.s32 1, %s6
  %s9 = scalar_select 0, %s8, %s6
  $region1: #{policy_head_forward.1} parent=0
    #allocation2 [shape = 'u8[1024]{0}', space=smem, size = 0x400, scoped, tag = 'input window, operand 0, single buffered']
    #allocation3 [shape = 's32[1]{0}', space=sflag, size = 0x4, scoped, tag = 'scoped memory for policy_head_forward.1']
    #allocation4 [shape = 's32[1]{0}', space=sflag, size = 0x4, scoped, tag = 'scoped memory for policy_head_forward.1']
    #allocation5 [shape = 's32[1]{0}', space=sflag, size = 0x4, scoped, tag = 'scoped memory for policy_head_forward.1']
    #allocation6 [shape = 'u8[131072]{0}', space=vmem, size = 0x20000, scoped, tag = 'input window, operand 2, single buffered']
    #allocation7 [shape = 'u8[65536]{0}', space=vmem, size = 0x10000, scoped, tag = 'input window, operand 3, single buffered']
    #allocation8 [shape = 's32[1]{0}', space=sflag, size = 0x4, scoped, tag = 'scoped memory for policy_head_forward.1']
    #allocation9 [shape = 'u8[1024]{0}', space=vmem, size = 0x400, scoped, tag = 'output window, operand 0, single buffered']
    %10 = vsyncpa [#allocation5], 0
    %11 = vsyncpa [#allocation3], 0
    %12 = vsyncpa [#allocation8], 0
    %13 = vsyncpa [#allocation4], 0
    // Predicated region
    $region2: #{policy_head_forward.1} parent=1 // pred_check
      _
    $region3: #{policy_head_forward.1} parent=1 // pred_check_branch
      %15 = sbr.rel (0) target = $region5
    $region4: #{policy_head_forward.1} parent=1 // pred_region
      %17 = vsyncadd [#allocation5], 0
      %s19 = sshll.u32 %s0, 4
      %s20 = int_to_ptr.vmem [resolvable:$true] %s19
      %22 = dma.vmem_to_smem %s20, 32, [#allocation2], [#allocation5]
    $region5: #{policy_head_forward.1} parent=1 // pred_fallthru
      _
    // Predicated region
    $region6: #{policy_head_forward.1} parent=1 // pred_check
      _
    $region7: #{policy_head_forward.1} parent=1 // pred_check_branch
      %24 = sbr.rel (0) target = $region9
    $region8: #{policy_head_forward.1} parent=1 // pred_region
      _
    $region9: #{policy_head_forward.1} parent=1 // pred_fallthru
      _
    // Predicated region
    $region10: #{policy_head_forward.1} parent=1 // pred_check
      _
    $region11: #{policy_head_forward.1} parent=1 // pred_check_branch
      %26 = sbr.rel (0) target = $region13
    $region12: #{policy_head_forward.1} parent=1 // pred_region
      %28 = vsyncadd [#allocation3], 0
      %s29 = sshll.u32 %s2, 4
      %s30 = int_to_ptr.hbm [resolvable:$true] %s29
      %s31 = sshll.u32 [#allocation6], 4
      %s32 = int_to_ptr.vmem [resolvable:$true] %s31
      %37 = dma.hbm_to_vmem [thread:$0]  %s30, 4096, %s32, [#allocation3], 128, 128, 8
    $region13: #{policy_head_forward.1} parent=1 // pred_fallthru
      _
    // Predicated region
    $region14: #{policy_head_forward.1} parent=1 // pred_check
      _
    $region15: #{policy_head_forward.1} parent=1 // pred_check_branch
      %39 = sbr.rel (0) target = $region17
    $region16: #{policy_head_forward.1} parent=1 // pred_region
      %41 = vsyncadd [#allocation8], 0
      %s42 = sshll.u32 %s3, 4
      %s43 = int_to_ptr.hbm [resolvable:$true] %s42
      %s44 = sshll.u32 [#allocation7], 4
      %s45 = int_to_ptr.vmem [resolvable:$true] %s44
      %50 = dma.hbm_to_vmem [thread:$0]  %s43, 2048, %s45, [#allocation8], 128, 128, 8
    $region17: #{policy_head_forward.1} parent=1 // pred_fallthru
      _
    // Predicated region
    $region18: #{policy_head_forward.1} parent=1 // pred_check
      _
    $region19: #{policy_head_forward.1} parent=1 // pred_check_branch
      %52 = sbr.rel (0) target = $region21
    $region20: #{policy_head_forward.1} parent=1 // pred_region
      _
    $region21: #{policy_head_forward.1} parent=1 // pred_fallthru
      _
    // Predicated region
    $region22: #{policy_head_forward.1} parent=1 // pred_check
      _
    $region23: #{policy_head_forward.1} parent=1 // pred_check_branch
      %54 = sbr.rel (0) target = $region25
    $region24: #{policy_head_forward.1} parent=1 // pred_region
      %56 = dma.done [#allocation5], 32
    $region25: #{policy_head_forward.1} parent=1 // pred_fallthru
      _
    // Predicated region
    $region26: #{policy_head_forward.1} parent=1 // pred_check
      _
    $region27: #{policy_head_forward.1} parent=1 // pred_check_branch
      %58 = sbr.rel (0) target = $region29
    $region28: #{policy_head_forward.1} parent=1 // pred_region
      %60 = dma.done [#allocation3], 4096
    $region29: #{policy_head_forward.1} parent=1 // pred_fallthru
      _
    // Predicated region
    $region30: #{policy_head_forward.1} parent=1 // pred_check
      _
    $region31: #{policy_head_forward.1} parent=1 // pred_check_branch
      %62 = sbr.rel (0) target = $region33
    $region32: #{policy_head_forward.1} parent=1 // pred_region
      %64 = dma.done [#allocation8], 2048
    $region33: #{policy_head_forward.1} parent=1 // pred_fallthru
      _
    %65 = sfence
    %v66 = vld [vmem:[%s1] sm:$0xf]
    %v67 = vld [vmem:[#allocation6] sm:$0xff]
    %v68 = vld [vmem:[#allocation6 + $0x8] sm:$0xff]
    %v69 = vld [vmem:[#allocation6 + $0x10] sm:$0xff]
    %v70 = vld [vmem:[#allocation6 + $0x18] sm:$0xff]
    %v71 = vld [vmem:[#allocation6 + $0x20] sm:$0xff]
    %v72 = vld [vmem:[#allocation6 + $0x28] sm:$0xff]
    %v73 = vld [vmem:[#allocation6 + $0x30] sm:$0xff]
    %v74 = vld [vmem:[#allocation6 + $0x38] sm:$0xff]
    %v75 = vld [vmem:[#allocation6 + $0x40] sm:$0xff]
    %v76 = vld [vmem:[#allocation6 + $0x48] sm:$0xff]
    %v77 = vld [vmem:[#allocation6 + $0x50] sm:$0xff]
    %v78 = vld [vmem:[#allocation6 + $0x58] sm:$0xff]
    %v79 = vld [vmem:[#allocation6 + $0x60] sm:$0xff]
    %v80 = vld [vmem:[#allocation6 + $0x68] sm:$0xff]
    %v81 = vld [vmem:[#allocation6 + $0x70] sm:$0xff]
    %v82 = vld [vmem:[#allocation6 + $0x78] sm:$0xff]
    %v83 = vld [vmem:[#allocation6 + $0x80] sm:$0xff]
    %v84 = vld [vmem:[#allocation6 + $0x88] sm:$0xff]
    %v85 = vld [vmem:[#allocation6 + $0x90] sm:$0xff]
    %v86 = vld [vmem:[#allocation6 + $0x98] sm:$0xff]
    %v87 = vld [vmem:[#allocation6 + $0xa0] sm:$0xff]
    %v88 = vld [vmem:[#allocation6 + $0xa8] sm:$0xff]
    %v89 = vld [vmem:[#allocation6 + $0xb0] sm:$0xff]
    %v90 = vld [vmem:[#allocation6 + $0xb8] sm:$0xff]
    %v91 = vld [vmem:[#allocation6 + $0xc0] sm:$0xff]
    %v92 = vld [vmem:[#allocation6 + $0xc8] sm:$0xff]
    %v93 = vld [vmem:[#allocation6 + $0xd0] sm:$0xff]
    %v94 = vld [vmem:[#allocation6 + $0xd8] sm:$0xff]
    %v95 = vld [vmem:[#allocation6 + $0xe0] sm:$0xff]
    %v96 = vld [vmem:[#allocation6 + $0xe8] sm:$0xff]
    %v97 = vld [vmem:[#allocation6 + $0xf0] sm:$0xff]
    %v98 = vld [vmem:[#allocation6 + $0xf8] sm:$0xff]
    %100 = vst [vmem:[#allocation1] ss:$4 sm:$0xff] %v66
    %v101 = vld.sshfl [vmem:[#allocation1] sm:$0xff pattern:$0x73625140]
    %v102 = vld.sshfl [vmem:[#allocation1 + $0x8] sm:$0xff pattern:$0x73625140]
    %105 = vmatpush.msra.mxu0 %v82
    %106 = vmatpush.msra.mxu0 %v81
    %107 = vmatpush.msra.mxu0 %v80
    %108 = vmatpush.msra.mxu0 %v79
    %109 = vmatpush.msra.mxu0 %v78
    %110 = vmatpush.msra.mxu0 %v77
    %111 = vmatpush.msra.mxu0 %v76
    %112 = vmatpush.msra.mxu0 %v75
    %113 = vmatpush.msra.mxu0 %v74
    %114 = vmatpush.msra.mxu0 %v73
    %115 = vmatpush.msra.mxu0 %v72
    %116 = vmatpush.msra.mxu0 %v71
    %117 = vmatpush.msra.mxu0 %v70
    %118 = vmatpush.msra.mxu0 %v69
    %119 = vmatpush.msra.mxu0 %v68
    %120 = vmatpush.msra.mxu0 %v67
    %121 = vmatmul.f32.gmra.mxu0 %v101
    %v122 = vpop.f32.mrf.mxu0
    %v123 = vadd.f32 0.0, %v122
    %124 = vdwg.mxu0
    %125 = vmatpush.msra.mxu0 %v98
    %126 = vmatpush.msra.mxu0 %v97
    %127 = vmatpush.msra.mxu0 %v96
    %128 = vmatpush.msra.mxu0 %v95
    %129 = vmatpush.msra.mxu0 %v94
    %130 = vmatpush.msra.mxu0 %v93
    %131 = vmatpush.msra.mxu0 %v92
    %132 = vmatpush.msra.mxu0 %v91
    %133 = vmatpush.msra.mxu0 %v90
    %134 = vmatpush.msra.mxu0 %v89
    %135 = vmatpush.msra.mxu0 %v88
    %136 = vmatpush.msra.mxu0 %v87
    %137 = vmatpush.msra.mxu0 %v86
    %138 = vmatpush.msra.mxu0 %v85
    %139 = vmatpush.msra.mxu0 %v84
    %140 = vmatpush.msra.mxu0 %v83
    %141 = vmatmul.f32.gmra.mxu0 %v102
    %v142 = vpop.f32.mrf.mxu0
    %v143 = vadd.f32 %v123, %v142
    %144 = vdwg.mxu0
    %v145 = vmul.f32 %v143, %v143
    %v146 = vlaneseq
    %v147 = vand.u32 %v146, 127
    %vm148 = vcmp.ge.s32.totalorder %v147, 0
    %vm149 = vcmp.lt.s32.totalorder %v147, 64
    %vm150 = vmand %vm148, %vm149
    %v151 = vsel %vm150, %v143, 0.0
    %vm152 = vcmask 1041408
    %v153 = vsel %vm152, %v151, 0.0
    %154 = vadd.xlane.f32.xlu0 %v153
    %v155 = vpop.xlane.xlu0 %154
    %v156 = vrot.slane %v155, 4
    %v157 = vadd.f32 %v155, %v156
    %v158 = vrot.slane %v157, 2
    %v159 = vadd.f32 %v157, %v158
    %v160 = vrot.slane %v159, 1
    %v161 = vadd.f32 %v159, %v160
    %s162 = vtos %v161
    %v163 = vsel %vm150, %v145, 0.0
    %v164 = vsel %vm152, %v163, 0.0
    %165 = vadd.xlane.f32.xlu0 %v164
    %v166 = vpop.xlane.xlu0 %165
    %v167 = vrot.slane %v166, 4
    %v168 = vadd.f32 %v166, %v167
    %v169 = vrot.slane %v168, 2
    %v170 = vadd.f32 %v168, %v169
    %v171 = vrot.slane %v170, 1
    %v172 = vadd.f32 %v170, %v171
    %s173 = vtos %v172
    %s174 = smul.f32 %s162, 0.0078125
    %s175 = smul.f32 %s173, 0.0078125
    %s176 = smul.f32 %s174, %s174
    %s177 = ssub.f32 %s175, %s176
    %s178 = smax.f32 %s177, 0.0
    %s179 = sld [smem:[#allocation2]]
    %s180 = sadd.f32 %s178, 1e-05
    %v181 = vstv %s180
    %v182 = vrsqrt.pop %v181
    %v183 = vmul.f32 %v182, %v181
    %v184 = vmul.f32 %v183, %v182
    %v185 = vmul.f32 0.5, %v184
    %v186 = vsub.f32 1.5, %v185
    %v187 = vmul.f32 %v182, %v186
    %vm188 = vweird.f32 %v181
    %vm189 = vweird.f32 %v182
    %vm190 = vmor %vm188, %vm189
    %v191 = vsel %vm190, %v182, %v187
    %s192 = vtos %v191
    %s193 = smul.f32 %s179, %s192
    %s194 = sld [smem:[#allocation2 + $0x80]]
    %s195 = smul.f32 %s174, %s193
    %s196 = ssub.f32 %s194, %s195
    %vm197 = vcmp.ge.s32.totalorder %v147, 64
    %vm198 = vcmp.lt.s32.totalorder %v147, 128
    %vm199 = vmand %vm197, %vm198
    %v200 = vsel %vm199, %v143, 0.0
    %v201 = vsel %vm152, %v200, 0.0
    %202 = vadd.xlane.f32.xlu0 %v201
    %v203 = vpop.xlane.xlu0 %202
    %v204 = vrot.slane %v203, 4
    %v205 = vadd.f32 %v203, %v204
    %v206 = vrot.slane %v205, 2
    %v207 = vadd.f32 %v205, %v206
    %v208 = vrot.slane %v207, 1
    %v209 = vadd.f32 %v207, %v208
    %s210 = vtos %v209
    %v211 = vsel %vm199, %v145, 0.0
    %v212 = vsel %vm152, %v211, 0.0
    %213 = vadd.xlane.f32.xlu0 %v212
    %v214 = vpop.xlane.xlu0 %213
    %v215 = vrot.slane %v214, 4
    %v216 = vadd.f32 %v214, %v215
    %v217 = vrot.slane %v216, 2
    %v218 = vadd.f32 %v216, %v217
    %v219 = vrot.slane %v218, 1
    %v220 = vadd.f32 %v218, %v219
    %s221 = vtos %v220
    %s222 = smul.f32 %s210, 0.0078125
    %s223 = smul.f32 %s221, 0.0078125
    %s224 = smul.f32 %s222, %s222
    %s225 = ssub.f32 %s223, %s224
    %s226 = smax.f32 %s225, 0.0
    %s227 = sld [smem:[#allocation2 + $0x1]]
    %s228 = sadd.f32 %s226, 1e-05
    %v229 = vstv %s228
    %v230 = vrsqrt.pop %v229
    %v231 = vmul.f32 %v230, %v229
    %v232 = vmul.f32 %v231, %v230
    %v233 = vmul.f32 0.5, %v232
    %v234 = vsub.f32 1.5, %v233
    %v235 = vmul.f32 %v230, %v234
    %vm236 = vweird.f32 %v229
    %vm237 = vweird.f32 %v230
    %vm238 = vmor %vm236, %vm237
    %v239 = vsel %vm238, %v230, %v235
    %s240 = vtos %v239
    %s241 = smul.f32 %s227, %s240
    %s242 = sld [smem:[#allocation2 + $0x81]]
    %s243 = smul.f32 %s222, %s241
    %s244 = ssub.f32 %s242, %s243
    %v245 = vstv %s193
    %v246 = vstv %s241
    %v247 = vsel %vm149, %v245, %v246
    %v248 = vstv %s196
    %v249 = vstv %s244
    %v250 = vsel %vm149, %v248, %v249
    %v251 = vmul.f32 %v143, %v247
    %v252 = vadd.f32 %v251, %v250
    %v253 = vmax.f32 %v252, 0.0
    %v254 = vld [vmem:[#allocation7] sm:$0xff]
    %v255 = vld [vmem:[#allocation7 + $0x8] sm:$0xff]
    %v256 = vld [vmem:[#allocation7 + $0x10] sm:$0xff]
    %v257 = vld [vmem:[#allocation7 + $0x18] sm:$0xff]
    %v258 = vld [vmem:[#allocation7 + $0x20] sm:$0xff]
    %v259 = vld [vmem:[#allocation7 + $0x28] sm:$0xff]
    %v260 = vld [vmem:[#allocation7 + $0x30] sm:$0xff]
    %v261 = vld [vmem:[#allocation7 + $0x38] sm:$0xff]
    %v262 = vld [vmem:[#allocation7 + $0x40] sm:$0xff]
    %v263 = vld [vmem:[#allocation7 + $0x48] sm:$0xff]
    %v264 = vld [vmem:[#allocation7 + $0x50] sm:$0xff]
    %v265 = vld [vmem:[#allocation7 + $0x58] sm:$0xff]
    %v266 = vld [vmem:[#allocation7 + $0x60] sm:$0xff]
    %v267 = vld [vmem:[#allocation7 + $0x68] sm:$0xff]
    %v268 = vld [vmem:[#allocation7 + $0x70] sm:$0xff]
    %v269 = vld [vmem:[#allocation7 + $0x78] sm:$0xff]
    %v270 = vld [vmem:[%s4] sm:$0x1]
    %v272 = vperm.slane %v270, 0
    %274 = vmatpush.msra.mxu0 %v269
    %275 = vmatpush.msra.mxu0 %v268
    %276 = vmatpush.msra.mxu0 %v267
    %277 = vmatpush.msra.mxu0 %v266
    %278 = vmatpush.msra.mxu0 %v265
    %279 = vmatpush.msra.mxu0 %v264
    %280 = vmatpush.msra.mxu0 %v263
    %281 = vmatpush.msra.mxu0 %v262
    %282 = vmatpush.msra.mxu0 %v261
    %283 = vmatpush.msra.mxu0 %v260
    %284 = vmatpush.msra.mxu0 %v259
    %285 = vmatpush.msra.mxu0 %v258
    %286 = vmatpush.msra.mxu0 %v257
    %287 = vmatpush.msra.mxu0 %v256
    %288 = vmatpush.msra.mxu0 %v255
    %289 = vmatpush.msra.mxu0 %v254
    %290 = vmatmul.f32.gmra.mxu0 %v253
    %v291 = vpop.f32.mrf.mxu0
    %v292 = vadd.f32 %v272, %v291
    %293 = vdwg.mxu0
    %294 = vst [vmem:[#allocation9] sm:$0x3] %v292
    // Predicated region
    $region34: #{policy_head_forward.1} parent=1 // pred_check
      _
    $region35: #{policy_head_forward.1} parent=1 // pred_check_branch
      %296 = sbr.rel (0) target = $region37
    $region36: #{policy_head_forward.1} parent=1 // pred_region
      %298 = vsyncadd [#allocation4], 0
      %s300 = sshll.u32 [#allocation9], 4
      %s301 = int_to_ptr.vmem [resolvable:$true] %s300
      %s302 = sshll.u32 %s5, 4
      %s303 = int_to_ptr.hbm [resolvable:$true] %s302
      %305 = dma.vmem_to_hbm [thread:$0]  %s301, 32, %s303, [#allocation4]
    $region37: #{policy_head_forward.1} parent=1 // pred_fallthru
      _
    // Predicated region
    $region38: #{policy_head_forward.1} parent=1 // pred_check
      _
    $region39: #{policy_head_forward.1} parent=1 // pred_check_branch
      %307 = sbr.rel (0) target = $region41
    $region40: #{policy_head_forward.1} parent=1 // pred_region
      %309 = dma.done [#allocation4], 32
    $region41: #{policy_head_forward.1} parent=1 // pred_fallthru
      _
    %310 = vsyncpa [#allocation3], 1
    %311 = vsyncpa [#allocation8], 1
    %312 = vsyncpa [#allocation4], 1
    %313 = vsyncpa [#allocation5], 1

</llo_original>
